<compile_context>
chip_gen: v7x
topology: tpu7x:2x2x1
jax: 0.10.0
libtpu: 0.0.40
codegen_flags: <defaults>
</compile_context>

<pallas_src>
import numpy as np
import jax
import jax.numpy as jnp
from jax.experimental import pallas as pl
from jax.experimental.pallas import tpu as pltpu


def _round_up(x, m):
    return ((x + m - 1) // m) * m


# ---------------------------------------------------------------------------
# Kernel 1: K / V projections, tiled over src rows. bf16 MXU matmul, f32 acc,
# bf16 storage.
# ---------------------------------------------------------------------------
def _kv_proj_kernel(hsrc_ref, wk_ref, wv_ref, k_ref, v_ref):
    h = hsrc_ref[...]
    k_ref[...] = jnp.dot(h, wk_ref[...],
                         preferred_element_type=jnp.float32).astype(jnp.bfloat16)
    v_ref[...] = jnp.dot(h, wv_ref[...],
                         preferred_element_type=jnp.float32).astype(jnp.bfloat16)


# ---------------------------------------------------------------------------
# Kernel 2: Q projection, tiled over dst rows (hoisted out of the attention
# kernel).
# ---------------------------------------------------------------------------
def _q_proj_kernel(hdst_ref, wq_ref, q_ref):
    q_ref[...] = jnp.dot(hdst_ref[...], wq_ref[...],
                         preferred_element_type=jnp.float32).astype(jnp.bfloat16)


# ---------------------------------------------------------------------------
# Kernel 3: masked attention. grid = (dst tiles [parallel], src tiles [arbitrary]).
# ---------------------------------------------------------------------------
def _att_kernel(q_ref, k_ref, v_ref, adj_ref, out_ref, m_sc, l_sc, acc_sc):
    j = pl.program_id(1)

    @pl.when(j == 0)
    def _():
        m_sc[...] = jnp.full_like(m_sc, -1e30)     # finite sentinel (no -inf NaNs)
        l_sc[...] = jnp.zeros_like(l_sc)
        acc_sc[...] = jnp.zeros_like(acc_sc)

    # scores[d, s] = q_d . k_s — bf16 operands on the MXU, f32 accumulation,
    # contracting last dims directly (no explicit k.T copy).
    scores = jax.lax.dot_general(
        q_ref[...], k_ref[...],
        dimension_numbers=(((1,), (1,)), ((), ())),
        preferred_element_type=jnp.float32)                     # (tm_d, tk_s) f32

    mask = adj_ref[...] > 0                                     # int8 mask, no astype
    # leaky_relu (slope 0.01) as a single max pass, then fuse the edge mask.
    lrelu = jnp.maximum(scores, 0.01 * scores)
    masked = jnp.where(mask, lrelu, jnp.float32(-1e30))

    # Online (flash-style) softmax update.
    m_prev = m_sc[...]
    m_new = jnp.maximum(m_prev, jnp.max(masked, axis=-1, keepdims=True))
    corr = jnp.exp(m_prev - m_new)
    # Keep this where: exp(masked - m_new) == 1 (not 0) for rows with no edges yet.
    p = jnp.where(mask, jnp.exp(masked - m_new), 0.0)

    l_sc[...] = corr * l_sc[...] + jnp.sum(p, axis=-1, keepdims=True)
    acc_sc[...] = corr * acc_sc[...] + jnp.dot(
        p.astype(jnp.bfloat16), v_ref[...], preferred_element_type=jnp.float32)
    m_sc[...] = m_new

    @pl.when(j == pl.num_programs(1) - 1)
    def _():
        # Guard: a dst node with zero in-edges has denom == 0 -> all-zero row.
        denom = jnp.maximum(l_sc[...], jnp.float32(1e-30))
        inv = pl.reciprocal(denom, approx=True)     # EUP slot (otherwise idle)
        inv = inv * (2.0 - denom * inv)             # one Newton step -> f32-exact
        out_ref[...] = (acc_sc[...] * inv).astype(out_ref.dtype)


def motivation_att_layer(h_src, h_dst, w_k, w_v, w_q, adj, *,
                         linear_transform=True, tile_dst=512, tile_src=1024):
    """h_src:(Ns,Din) h_dst:(Nd,Din) w_*:(Dout,Din) torch-Linear layout, adj:(Nd,Ns)."""
    f32, bf16 = jnp.float32, jnp.bfloat16
    n_src, in_dim = h_src.shape
    n_dst = h_dst.shape[0]

    if not linear_transform:
        # Identity path: v = k = h_src, q = h_dst.
        w_k = w_v = w_q = jnp.eye(in_dim, dtype=f32)
    out_dim = w_k.shape[0]

    LANE = 128
    d_out_p = _round_up(out_dim, LANE)                 # lane-dense q/k/v/out
    d_in_p = _round_up(in_dim, LANE)                   # lane-dense projection loads

    # dst tile: multiple of 32 (int8 adj sublane packing); capped at ceil(Nd/2) so
    # the "parallel" dst axis has >= 2 tiles and shards across both v7x TCs.
    tm_d = max(32, min(tile_dst, _round_up((n_dst + 1) // 2, 32)))
    tk_s = min(tile_src, _round_up(n_src, LANE))       # src tile (lane mult)
    n_dst_p = _round_up(n_dst, tm_d)
    n_src_p = _round_up(n_src, tk_s)

    def prep_w(w):   # (Dout, Din) torch layout -> (Din_p, Dout_p) bf16, lane-dense
        wt = jnp.asarray(w, f32).T
        wt = jnp.pad(wt, ((0, d_in_p - in_dim), (0, d_out_p - out_dim)))
        return wt.astype(bf16)

    wk_t, wv_t, wq_t = prep_w(w_k), prep_w(w_v), prep_w(w_q)
    hs = jnp.pad(jnp.asarray(h_src, f32),
                 ((0, n_src_p - n_src), (0, d_in_p - in_dim))).astype(bf16)
    hd = jnp.pad(jnp.asarray(h_dst, f32),
                 ((0, n_dst_p - n_dst), (0, d_in_p - in_dim))).astype(bf16)
    adj_i8 = jnp.pad((jnp.asarray(adj) != 0).astype(jnp.int8),
                     ((0, n_dst_p - n_dst), (0, n_src_p - n_src)))

    # ---- phase 1: K / V projections (one pass over h_src, bf16 storage) -----
    k, v = pl.pallas_call(
        _kv_proj_kernel,
        out_shape=(jax.ShapeDtypeStruct((n_src_p, d_out_p), bf16),
                   jax.ShapeDtypeStruct((n_src_p, d_out_p), bf16)),
        grid=(n_src_p // tk_s,),
        in_specs=[pl.BlockSpec((tk_s, d_in_p), lambda i: (i, 0)),
                  pl.BlockSpec((d_in_p, d_out_p), lambda i: (0, 0)),
                  pl.BlockSpec((d_in_p, d_out_p), lambda i: (0, 0))],
        out_specs=(pl.BlockSpec((tk_s, d_out_p), lambda i: (i, 0)),
                   pl.BlockSpec((tk_s, d_out_p), lambda i: (i, 0))),
        compiler_params=pltpu.CompilerParams(dimension_semantics=("parallel",)),
    )(hs, wk_t, wv_t)

    # ---- phase 1b: Q projection (hoisted out of the attention kernel) -------
    q = pl.pallas_call(
        _q_proj_kernel,
        out_shape=jax.ShapeDtypeStruct((n_dst_p, d_out_p), bf16),
        grid=(n_dst_p // tm_d,),
        in_specs=[pl.BlockSpec((tm_d, d_in_p), lambda i: (i, 0)),
                  pl.BlockSpec((d_in_p, d_out_p), lambda i: (0, 0))],
        out_specs=pl.BlockSpec((tm_d, d_out_p), lambda i: (i, 0)),
        compiler_params=pltpu.CompilerParams(dimension_semantics=("parallel",)),
    )(hd, wq_t)

    # ---- phase 2: tiled masked attention with online softmax ----------------
    out_p = pl.pallas_call(
        _att_kernel,
        out_shape=jax.ShapeDtypeStruct((n_dst_p, d_out_p), f32),
        grid=(n_dst_p // tm_d, n_src_p // tk_s),
        in_specs=[pl.BlockSpec((tm_d, d_out_p), lambda i, j: (i, 0)),    # Q (bf16)
                  pl.BlockSpec((tk_s, d_out_p), lambda i, j: (j, 0)),    # K (bf16)
                  pl.BlockSpec((tk_s, d_out_p), lambda i, j: (j, 0)),    # V (bf16)
                  pl.BlockSpec((tm_d, tk_s), lambda i, j: (i, j))],      # adj (int8)
        out_specs=pl.BlockSpec((tm_d, d_out_p), lambda i, j: (i, 0)),
        scratch_shapes=[pltpu.VMEM((tm_d, 1), f32),         # running max
                        pltpu.VMEM((tm_d, 1), f32),         # running denom
                        pltpu.VMEM((tm_d, d_out_p), f32)],  # weighted-V acc
        compiler_params=pltpu.CompilerParams(
            dimension_semantics=("parallel", "arbitrary"),
            vmem_limit_bytes=48 * 1024 * 1024),   # headroom for big tiles; < 64 MiB (v7x)
    )(q, k, v, adj_i8)

    return out_p[:n_dst, :out_dim]


def _reference(h_src, h_dst, w_k, w_v, w_q, adj):
    """Pure-JAX reference mirroring the DGL reduce_func math (bf16-quantized
    projections to match the kernel's mixed-precision path)."""
    f32, bf16 = jnp.float32, jnp.bfloat16

    def bq(x):
        return x.astype(bf16).astype(f32)

    k = bq(jnp.dot(bq(h_src), bq(w_k.T)))
    v = bq(jnp.dot(bq(h_src), bq(w_v.T)))
    q = bq(jnp.dot(bq(h_dst), bq(w_q.T)))
    scores = q @ k.T                                  # (Nd, Ns)
    scores = jnp.where(scores > 0, scores, 0.01 * scores)
    mask = adj > 0.5
    masked = jnp.where(mask, scores, -jnp.inf)
    alpha = jax.nn.softmax(masked, axis=-1)
    alpha = jnp.where(mask, alpha, 0.0)               # zero-edge rows -> 0
    return alpha @ v


def _xavier_normal(key, out_dim, in_dim, gain):
    # nn.init.xavier_normal_: std = gain * sqrt(2 / (fan_in + fan_out))
    std = gain * np.sqrt(2.0 / (in_dim + out_dim))
    return std * jax.random.normal(key, (out_dim, in_dim), dtype=jnp.float32)


if __name__ == "__main__":
    key = jax.random.PRNGKey(0)
    k_hs, k_hd, k_wk, k_wv, k_wq, k_adj = jax.random.split(key, 6)

    N_SRC, N_DST = 16, 8
    IN_DIM, OUT_DIM = 32, 32
    gain = float(np.sqrt(2.0))  # nn.init.calculate_gain('relu')

    h_src = jax.random.normal(k_hs, (N_SRC, IN_DIM), dtype=jnp.float32)
    h_dst = jax.random.normal(k_hd, (N_DST, IN_DIM), dtype=jnp.float32)
    w_k = _xavier_normal(k_wk, OUT_DIM, IN_DIM, gain)
    w_v = _xavier_normal(k_wv, OUT_DIM, IN_DIM, gain)
    w_q = _xavier_normal(k_wq, OUT_DIM, IN_DIM, gain)

    # Deterministic random bipartite graph; last dst node has NO in-edges to
    # exercise the zero-denominator guard (must produce an all-zero row).
    adj = jax.random.bernoulli(k_adj, 0.5, (N_DST, N_SRC)).astype(jnp.float32)
    adj = adj.at[:, 0].set(1.0)
    adj = adj.at[N_DST - 1, :].set(0.0)

    out = motivation_att_layer(h_src, h_dst, w_k, w_v, w_q, adj,
                               linear_transform=True)
    out = jax.block_until_ready(out)

    ref = _reference(h_src, h_dst, w_k, w_v, w_q, adj)
    # bf16 MXU operands (per perf review) -> looser tolerance than pure f32.
    np.testing.assert_allclose(np.asarray(out), np.asarray(ref),
                               rtol=1e-2, atol=1e-2)
    print("KERNEL_OK")
</pallas_src>

<mosaic_0001>
module attributes {stable_mosaic.version = 11 : i64} {
  func.func @_kv_proj_kernel(%arg0: i32, %arg1: memref<128x128xbf16, #tpu.memory_space<vmem>>, %arg2: memref<128x128xbf16, #tpu.memory_space<vmem>>, %arg3: memref<128x128xbf16, #tpu.memory_space<vmem>>, %arg4: memref<128x128xbf16, #tpu.memory_space<vmem>>, %arg5: memref<128x128xbf16, #tpu.memory_space<vmem>>) attributes {dimension_semantics = [#tpu.dimension_semantics<parallel>], iteration_bounds = array<i64: 1>, scalar_prefetch = 0 : i64, scratch_operands = 0 : i64, tpu.core_type = #tpu.core_type<tc>, window_params = [{transform_indices = @transform_0, window_bounds = array<i64: 128, 128>}, {pipeline_mode = #tpu.pipeline_mode<synchronous>, transform_indices = @transform_1, window_bounds = array<i64: 128, 128>}, {pipeline_mode = #tpu.pipeline_mode<synchronous>, transform_indices = @transform_2, window_bounds = array<i64: 128, 128>}, {transform_indices = @transform_3, window_bounds = array<i64: 128, 128>}, {transform_indices = @transform_4, window_bounds = array<i64: 128, 128>}]} {
    %c0 = arith.constant 0 : index
    %c0_0 = arith.constant 0 : index
    %0 = vector.load %arg1[%c0, %c0_0] : memref<128x128xbf16, #tpu.memory_space<vmem>>, vector<128x128xbf16>
    %c0_1 = arith.constant 0 : index
    %c0_2 = arith.constant 0 : index
    %1 = vector.load %arg2[%c0_1, %c0_2] : memref<128x128xbf16, #tpu.memory_space<vmem>>, vector<128x128xbf16>
    %cst = arith.constant dense<0.000000e+00> : vector<128x128xf32>
    %2 = tpu.matmul %0, %1, %cst {dimension_numbers = #tpu.dot_dimension_numbers<[1], [0], [0], [1], [0, 0, 1, 1], [], []>} : vector<128x128xbf16>, vector<128x128xbf16>, vector<128x128xf32> -> vector<128x128xf32>
    %3 = arith.truncf %2 : vector<128x128xf32> to vector<128x128xbf16>
    %c0_3 = arith.constant 0 : index
    %c0_4 = arith.constant 0 : index
    %4 = vector.load %arg4[%c0_3, %c0_4] : memref<128x128xbf16, #tpu.memory_space<vmem>>, vector<128x128xbf16>
    tpu.vector_store %arg4[%c0_3, %c0_4], %3 {strides = array<i32>} : memref<128x128xbf16, #tpu.memory_space<vmem>>, vector<128x128xbf16>,
    %c0_5 = arith.constant 0 : index
    %c0_6 = arith.constant 0 : index
    %5 = vector.load %arg3[%c0_5, %c0_6] : memref<128x128xbf16, #tpu.memory_space<vmem>>, vector<128x128xbf16>
    %cst_7 = arith.constant dense<0.000000e+00> : vector<128x128xf32>
    %6 = tpu.matmul %0, %5, %cst_7 {dimension_numbers = #tpu.dot_dimension_numbers<[1], [0], [0], [1], [0, 0, 1, 1], [], []>} : vector<128x128xbf16>, vector<128x128xbf16>, vector<128x128xf32> -> vector<128x128xf32>
    %7 = arith.truncf %6 : vector<128x128xf32> to vector<128x128xbf16>
    %c0_8 = arith.constant 0 : index
    %c0_9 = arith.constant 0 : index
    %8 = vector.load %arg5[%c0_8, %c0_9] : memref<128x128xbf16, #tpu.memory_space<vmem>>, vector<128x128xbf16>
    tpu.vector_store %arg5[%c0_8, %c0_9], %7 {strides = array<i32>} : memref<128x128xbf16, #tpu.memory_space<vmem>>, vector<128x128xbf16>,
    return
  }
  func.func @transform_0(%arg0: i32) -> (i32, i32) {
    %c0_i32 = arith.constant 0 : i32
    %c0_i32_0 = arith.constant 0 : i32
    return %arg0, %c0_i32 : i32, i32
  }
  func.func @transform_1(%arg0: i32) -> (i32, i32) {
    %c0_i32 = arith.constant 0 : i32
    %c0_i32_0 = arith.constant 0 : i32
    %c0_i32_1 = arith.constant 0 : i32
    return %c0_i32, %c0_i32_0 : i32, i32
  }
  func.func @transform_2(%arg0: i32) -> (i32, i32) {
    %c0_i32 = arith.constant 0 : i32
    %c0_i32_0 = arith.constant 0 : i32
    %c0_i32_1 = arith.constant 0 : i32
    return %c0_i32, %c0_i32_0 : i32, i32
  }
  func.func @transform_3(%arg0: i32) -> (i32, i32) {
    %c0_i32 = arith.constant 0 : i32
    %c0_i32_0 = arith.constant 0 : i32
    return %arg0, %c0_i32 : i32, i32
  }
  func.func @transform_4(%arg0: i32) -> (i32, i32) {
    %c0_i32 = arith.constant 0 : i32
    %c0_i32_0 = arith.constant 0 : i32
    return %arg0, %c0_i32 : i32, i32
  }
}

</mosaic_0001>

<llo_original>
// kernel: tpu_custom_call.1
$region0: #{tpu_custom_call.1}
  #allocation0 [shape = 'u32[]', space=smem, size = 0x4, offset = 0x4, fixed_abs, tag = 'smem constant byte address 0x4 - core index']
  #allocation1 [shape = 'u32[144,128]{1,0:T(1,128)}', space=vmem, size = 0x12000, scoped, tag = 'internal scratch']
  %s0 = inlined_call_operand.hbm [shape: bf16[128,128], index: 0, kind: input, shape index: {}]
  %s1 = inlined_call_operand.hbm [shape: bf16[128,128], index: 1, kind: input, shape index: {}]
  %s2 = inlined_call_operand.hbm [shape: bf16[128,128], index: 2, kind: input, shape index: {}]
  %s3 = inlined_call_operand.hbm [shape: bf16[128,128], index: 3, kind: output, shape index: {0}]
  %s4 = inlined_call_operand.hbm [shape: bf16[128,128], index: 4, kind: output, shape index: {1}]
  %5 = xla_tuple %s3, %s4
  %s6 = sld [smem:[#allocation0]]
  $region42: #{tpu_custom_call.1} parent=0
    _
  %s8 = ssub.s32 1, %s6
  %s9 = scalar_select 0, %s8, %s6
  $region1: #{tpu_custom_call.1} parent=0
    #allocation2 [shape = 'u8[32768]{0}', space=vmem, size = 0x8000, scoped, tag = 'input window, operand 0, single buffered']
    #allocation3 [shape = 's32[1]{0}', space=sflag, size = 0x4, scoped, tag = 'scoped memory for tpu_custom_call.1']
    #allocation4 [shape = 's32[1]{0}', space=sflag, size = 0x4, scoped, tag = 'scoped memory for tpu_custom_call.1']
    #allocation5 [shape = 'u8[32768]{0}', space=vmem, size = 0x8000, scoped, tag = 'input window, operand 1, single buffered']
    #allocation6 [shape = 's32[1]{0}', space=sflag, size = 0x4, scoped, tag = 'scoped memory for tpu_custom_call.1']
    #allocation7 [shape = 'u8[32768]{0}', space=vmem, size = 0x8000, scoped, tag = 'input window, operand 2, single buffered']
    #allocation8 [shape = 'u8[32768]{0}', space=vmem, size = 0x8000, scoped, tag = 'output window, operand 0, single buffered']
    #allocation9 [shape = 'u8[32768]{0}', space=vmem, size = 0x8000, scoped, tag = 'output window, operand 1, single buffered']
    #allocation10 [shape = 's32[1]{0}', space=sflag, size = 0x4, scoped, tag = 'scoped memory for tpu_custom_call.1']
    %10 = vsyncpa [#allocation3], 0
    %11 = vsyncpa [#allocation6], 0
    %12 = vsyncpa [#allocation4], 0
    %13 = vsyncpa [#allocation10], 0
    // Predicated region
    $region2: #{tpu_custom_call.1} parent=1 // pred_check
      _
    $region3: #{tpu_custom_call.1} parent=1 // pred_check_branch
      %15 = sbr.rel (0) target = $region5
    $region4: #{tpu_custom_call.1} parent=1 // pred_region
      %s17 = ssub.s32 1024, 1024
      %18 = vsyncadd [#allocation3], %s17
      %s19 = sshll.u32 [#allocation2], 4
      %s20 = int_to_ptr.vmem [resolvable:$true] %s19
      %25 = dma.hbm_to_vmem [thread:$0]  %s0, 1024, %s20, [#allocation3], 64, 64, 4
    $region5: #{tpu_custom_call.1} parent=1 // pred_fallthru
      _
    // Predicated region
    $region6: #{tpu_custom_call.1} parent=1 // pred_check
      _
    $region7: #{tpu_custom_call.1} parent=1 // pred_check_branch
      %27 = sbr.rel (0) target = $region9
    $region8: #{tpu_custom_call.1} parent=1 // pred_region
      %s29 = ssub.s32 1024, 1024
      %30 = vsyncadd [#allocation6], %s29
      %s31 = sshll.u32 [#allocation5], 4
      %s32 = int_to_ptr.vmem [resolvable:$true] %s31
      %37 = dma.hbm_to_vmem [thread:$0]  %s1, 1024, %s32, [#allocation6], 64, 64, 4
    $region9: #{tpu_custom_call.1} parent=1 // pred_fallthru
      _
    // Predicated region
    $region10: #{tpu_custom_call.1} parent=1 // pred_check
      _
    $region11: #{tpu_custom_call.1} parent=1 // pred_check_branch
      %39 = sbr.rel (0) target = $region13
    $region12: #{tpu_custom_call.1} parent=1 // pred_region
      %s41 = ssub.s32 1024, 1024
      %42 = vsyncadd [#allocation6], %s41
      %s43 = sshll.u32 [#allocation7], 4
      %s44 = int_to_ptr.vmem [resolvable:$true] %s43
      %49 = dma.hbm_to_vmem [thread:$0]  %s2, 1024, %s44, [#allocation6], 64, 64, 4
    $region13: #{tpu_custom_call.1} parent=1 // pred_fallthru
      _
    // Predicated region
    $region14: #{tpu_custom_call.1} parent=1 // pred_check
      _
    $region15: #{tpu_custom_call.1} parent=1 // pred_check_branch
      %51 = sbr.rel (0) target = $region17
    $region16: #{tpu_custom_call.1} parent=1 // pred_region
      %52 = dma.done [#allocation3], 1024
    $region17: #{tpu_custom_call.1} parent=1 // pred_fallthru
      _
    // Predicated region
    $region18: #{tpu_custom_call.1} parent=1 // pred_check
      _
    $region19: #{tpu_custom_call.1} parent=1 // pred_check_branch
      %54 = sbr.rel (0) target = $region21
    $region20: #{tpu_custom_call.1} parent=1 // pred_region
      %55 = dma.done [#allocation6], 1024
    $region21: #{tpu_custom_call.1} parent=1 // pred_fallthru
      _
    // Predicated region
    $region22: #{tpu_custom_call.1} parent=1 // pred_check
      _
    $region23: #{tpu_custom_call.1} parent=1 // pred_check_branch
      %57 = sbr.rel (0) target = $region25
    $region24: #{tpu_custom_call.1} parent=1 // pred_region
      %58 = dma.done [#allocation6], 1024
    $region25: #{tpu_custom_call.1} parent=1 // pred_fallthru
      _
    %v60 = vld [vmem:[#allocation2] sm:$0xf]
    %v61 = vld [vmem:[#allocation2 + $0x4] sm:$0xf]
    %v62 = vld [vmem:[#allocation2 + $0x8] sm:$0xf]
    %v63 = vld [vmem:[#allocation2 + $0xc] sm:$0xf]
    %v64 = vld [vmem:[#allocation2 + $0x10] sm:$0xf]
    %v65 = vld [vmem:[#allocation2 + $0x14] sm:$0xf]
    %v66 = vld [vmem:[#allocation2 + $0x18] sm:$0xf]
    %v67 = vld [vmem:[#allocation2 + $0x1c] sm:$0xf]
    %v68 = vld [vmem:[#allocation2 + $0x20] sm:$0xf]
    %v69 = vld [vmem:[#allocation2 + $0x24] sm:$0xf]
    %v70 = vld [vmem:[#allocation2 + $0x28] sm:$0xf]
    %v71 = vld [vmem:[#allocation2 + $0x2c] sm:$0xf]
    %v72 = vld [vmem:[#allocation2 + $0x30] sm:$0xf]
    %v73 = vld [vmem:[#allocation2 + $0x34] sm:$0xf]
    %v74 = vld [vmem:[#allocation2 + $0x38] sm:$0xf]
    %v75 = vld [vmem:[#allocation2 + $0x3c] sm:$0xf]
    %v76 = vld [vmem:[#allocation5] sm:$0xf]
    %v77 = vld [vmem:[#allocation5 + $0x4] sm:$0xf]
    %v78 = vld [vmem:[#allocation5 + $0x8] sm:$0xf]
    %v79 = vld [vmem:[#allocation5 + $0xc] sm:$0xf]
    %v80 = vld [vmem:[#allocation5 + $0x10] sm:$0xf]
    %v81 = vld [vmem:[#allocation5 + $0x14] sm:$0xf]
    %v82 = vld [vmem:[#allocation5 + $0x18] sm:$0xf]
    %v83 = vld [vmem:[#allocation5 + $0x1c] sm:$0xf]
    %v84 = vld [vmem:[#allocation5 + $0x20] sm:$0xf]
    %v85 = vld [vmem:[#allocation5 + $0x24] sm:$0xf]
    %v86 = vld [vmem:[#allocation5 + $0x28] sm:$0xf]
    %v87 = vld [vmem:[#allocation5 + $0x2c] sm:$0xf]
    %v88 = vld [vmem:[#allocation5 + $0x30] sm:$0xf]
    %v89 = vld [vmem:[#allocation5 + $0x34] sm:$0xf]
    %v90 = vld [vmem:[#allocation5 + $0x38] sm:$0xf]
    %v91 = vld [vmem:[#allocation5 + $0x3c] sm:$0xf]
    %v108 = vunpack.c.l.b16 %v60
    %v109 = vunpack.c.l.b16 %v61
    %v110 = vunpack.c.l.b16 %v62
    %v111 = vunpack.c.l.b16 %v63
    %v112 = vunpack.c.l.b16 %v64
    %v113 = vunpack.c.l.b16 %v65
    %v114 = vunpack.c.l.b16 %v66
    %v115 = vunpack.c.l.b16 %v67
    %v116 = vunpack.c.l.b16 %v68
    %v117 = vunpack.c.l.b16 %v69
    %v118 = vunpack.c.l.b16 %v70
    %v119 = vunpack.c.l.b16 %v71
    %v120 = vunpack.c.l.b16 %v72
    %v121 = vunpack.c.l.b16 %v73
    %v122 = vunpack.c.l.b16 %v74
    %v123 = vunpack.c.l.b16 %v75
    %v124 = vpack.c.b16 %v109, %v108
    %v125 = vpack.c.b16 %v111, %v110
    %v126 = vpack.c.b16 %v113, %v112
    %v127 = vpack.c.b16 %v115, %v114
    %v128 = vpack.c.b16 %v117, %v116
    %v129 = vpack.c.b16 %v119, %v118
    %v130 = vpack.c.b16 %v121, %v120
    %v131 = vpack.c.b16 %v123, %v122
    %v156 = vunpack.c.l.b16 %v76
    %v157 = vunpack.c.l.b16 %v77
    %v158 = vunpack.c.l.b16 %v78
    %v159 = vunpack.c.l.b16 %v79
    %v160 = vunpack.c.l.b16 %v80
    %v161 = vunpack.c.l.b16 %v81
    %v162 = vunpack.c.l.b16 %v82
    %v163 = vunpack.c.l.b16 %v83
    %v164 = vunpack.c.l.b16 %v84
    %v165 = vunpack.c.l.b16 %v85
    %v166 = vunpack.c.l.b16 %v86
    %v167 = vunpack.c.l.b16 %v87
    %v168 = vunpack.c.l.b16 %v88
    %v169 = vunpack.c.l.b16 %v89
    %v170 = vunpack.c.l.b16 %v90
    %v171 = vunpack.c.l.b16 %v91
    %v172 = vpack.c.b16 %v157, %v156
    %v173 = vpack.c.b16 %v159, %v158
    %v174 = vpack.c.b16 %v161, %v160
    %v175 = vpack.c.b16 %v163, %v162
    %v176 = vpack.c.b16 %v165, %v164
    %v177 = vpack.c.b16 %v167, %v166
    %v178 = vpack.c.b16 %v169, %v168
    %v179 = vpack.c.b16 %v171, %v170
    %188 = vmatprep.subr.bf16.mxu0 0
    %189 = vmatpush1.bf16.msra.mxu0 %v172
    %190 = vmatprep.subr.bf16.mxu0 0
    %191 = vmatpush1.bf16.msra.mxu0 %v173
    %192 = vmatprep.subr.bf16.mxu0 0
    %193 = vmatpush1.bf16.msra.mxu0 %v174
    %194 = vmatprep.subr.bf16.mxu0 0
    %195 = vmatpush1.bf16.msra.mxu0 %v175
    %196 = vmatprep.subr.bf16.mxu0 0
    %197 = vmatpush1.bf16.msra.mxu0 %v176
    %198 = vmatprep.subr.bf16.mxu0 0
    %199 = vmatpush1.bf16.msra.mxu0 %v177
    %200 = vmatprep.subr.bf16.mxu0 0
    %201 = vmatpush1.bf16.msra.mxu0 %v178
    %202 = vmatprep.subr.bf16.mxu0 0
    %203 = vmatpush1.bf16.msra.mxu0 %v179
    %204 = vmatprep.subr.bf16.mxu0 0
    %205 = vmatpush1.bf16.msra.mxu0 0
    %206 = vmatprep.subr.bf16.mxu0 0
    %207 = vmatpush1.bf16.msra.mxu0 0
    %208 = vmatprep.subr.bf16.mxu0 0
    %209 = vmatpush1.bf16.msra.mxu0 0
    %210 = vmatprep.subr.bf16.mxu0 0
    %211 = vmatpush1.bf16.msra.mxu0 0
    %212 = vmatprep.subr.bf16.mxu0 0
    %213 = vmatpush1.bf16.msra.mxu0 0
    %214 = vmatprep.subr.bf16.mxu0 0
    %215 = vmatpush1.bf16.msra.mxu0 0
    %216 = vmatprep.subr.bf16.mxu0 0
    %217 = vmatpush1.bf16.msra.mxu0 0
    %218 = vmatprep.subr.bf16.mxu0 0
    %219 = vmatpush1.bf16.msra.mxu0 0
    %220 = vmatprep.mubr.bf16.mxu0 0
    %221 = vmatmul.mubr.bf16.gmra.mrb[0].mxu0 %v124
    %v222 = vpop.f32.mrb[0].mxu0
    %v223 = vadd.f32 0.0, %v222
    %v224 = vpop.f32.mrb[0].mxu0
    %v225 = vpop.f32.mrb[0].mxu0
    %v226 = vadd.f32 0.0, %v225
    %v227 = vpop.f32.mrb[0].mxu0
    %228 = vmatprep.mubr.bf16.mxu0 0
    %229 = vmatmul.mubr.bf16.gmra.mrb[0].mxu0 %v125
    %v230 = vpop.f32.mrb[0].mxu0
    %v231 = vadd.f32 0.0, %v230
    %v232 = vpop.f32.mrb[0].mxu0
    %v233 = vpop.f32.mrb[0].mxu0
    %v234 = vadd.f32 0.0, %v233
    %v235 = vpop.f32.mrb[0].mxu0
    %236 = vmatprep.mubr.bf16.mxu0 0
    %237 = vmatmul.mubr.bf16.gmra.mrb[0].mxu0 %v126
    %v238 = vpop.f32.mrb[0].mxu0
    %v239 = vadd.f32 0.0, %v238
    %v240 = vpop.f32.mrb[0].mxu0
    %v241 = vpop.f32.mrb[0].mxu0
    %v242 = vadd.f32 0.0, %v241
    %v243 = vpop.f32.mrb[0].mxu0
    %244 = vmatprep.mubr.bf16.mxu0 0
    %245 = vmatmul.mubr.bf16.gmra.mrb[0].mxu0 %v127
    %v246 = vpop.f32.mrb[0].mxu0
    %v247 = vadd.f32 0.0, %v246
    %v248 = vpop.f32.mrb[0].mxu0
    %v249 = vpop.f32.mrb[0].mxu0
    %v250 = vadd.f32 0.0, %v249
    %v251 = vpop.f32.mrb[0].mxu0
    %252 = vmatprep.mubr.bf16.mxu0 0
    %253 = vmatmul.mubr.bf16.gmra.mrb[0].mxu0 %v128
    %v254 = vpop.f32.mrb[0].mxu0
    %v255 = vadd.f32 0.0, %v254
    %v256 = vpop.f32.mrb[0].mxu0
    %v257 = vpop.f32.mrb[0].mxu0
    %v258 = vadd.f32 0.0, %v257
    %v259 = vpop.f32.mrb[0].mxu0
    %260 = vmatprep.mubr.bf16.mxu0 0
    %261 = vmatmul.mubr.bf16.gmra.mrb[0].mxu0 %v129
    %v262 = vpop.f32.mrb[0].mxu0
    %v263 = vadd.f32 0.0, %v262
    %v264 = vpop.f32.mrb[0].mxu0
    %v265 = vpop.f32.mrb[0].mxu0
    %v266 = vadd.f32 0.0, %v265
    %v267 = vpop.f32.mrb[0].mxu0
    %268 = vmatprep.mubr.bf16.mxu0 0
    %269 = vmatmul.mubr.bf16.gmra.mrb[0].mxu0 %v130
    %v270 = vpop.f32.mrb[0].mxu0
    %v271 = vadd.f32 0.0, %v270
    %v272 = vpop.f32.mrb[0].mxu0
    %v273 = vpop.f32.mrb[0].mxu0
    %v274 = vadd.f32 0.0, %v273
    %v275 = vpop.f32.mrb[0].mxu0
    %276 = vmatprep.mubr.bf16.mxu0 0
    %277 = vmatmul.mubr.bf16.gmra.mrb[0].mxu0 %v131
    %v278 = vpop.f32.mrb[0].mxu0
    %v279 = vadd.f32 0.0, %v278
    %v280 = vpop.f32.mrb[0].mxu0
    %v281 = vpop.f32.mrb[0].mxu0
    %v282 = vadd.f32 0.0, %v281
    %v283 = vpop.f32.mrb[0].mxu0
    %284 = vdwg.mxu0
    %v285 = vpack.c.bf16 %v226, %v223
    %v286 = vpack.c.bf16 %v234, %v231
    %v287 = vpack.c.bf16 %v242, %v239
    %v288 = vpack.c.bf16 %v250, %v247
    %v289 = vpack.c.bf16 %v258, %v255
    %v290 = vpack.c.bf16 %v266, %v263
    %v291 = vpack.c.bf16 %v274, %v271
    %v292 = vpack.c.bf16 %v282, %v279
    %v301 = vunpack.c.l.b16 %v285
    %v302 = vunpack.c.h.b16 %v285
    %v303 = vunpack.c.l.b16 %v286
    %v304 = vunpack.c.h.b16 %v286
    %v305 = vunpack.c.l.b16 %v287
    %v306 = vunpack.c.h.b16 %v287
    %v307 = vunpack.c.l.b16 %v288
    %v308 = vunpack.c.h.b16 %v288
    %v309 = vunpack.c.l.b16 %v289
    %v310 = vunpack.c.h.b16 %v289
    %v311 = vunpack.c.l.b16 %v290
    %v312 = vunpack.c.h.b16 %v290
    %v313 = vunpack.c.l.b16 %v291
    %v314 = vunpack.c.h.b16 %v291
    %v315 = vunpack.c.l.b16 %v292
    %v316 = vunpack.c.h.b16 %v292
    %v317 = vpack.c.b16 %v301, %v301
    %v318 = vpack.c.b16 %v302, %v302
    %v319 = vpack.c.b16 %v303, %v303
    %v320 = vpack.c.b16 %v304, %v304
    %v321 = vpack.c.b16 %v305, %v305
    %v322 = vpack.c.b16 %v306, %v306
    %v323 = vpack.c.b16 %v307, %v307
    %v324 = vpack.c.b16 %v308, %v308
    %v325 = vpack.c.b16 %v309, %v309
    %v326 = vpack.c.b16 %v310, %v310
    %v327 = vpack.c.b16 %v311, %v311
    %v328 = vpack.c.b16 %v312, %v312
    %v329 = vpack.c.b16 %v313, %v313
    %v330 = vpack.c.b16 %v314, %v314
    %v331 = vpack.c.b16 %v315, %v315
    %v332 = vpack.c.b16 %v316, %v316
    %349 = vst [vmem:[#allocation8] sm:$0xf] %v317
    %350 = vst [vmem:[#allocation8 + $0x4] sm:$0xf] %v318
    %351 = vst [vmem:[#allocation8 + $0x8] sm:$0xf] %v319
    %352 = vst [vmem:[#allocation8 + $0xc] sm:$0xf] %v320
    %353 = vst [vmem:[#allocation8 + $0x10] sm:$0xf] %v321
    %354 = vst [vmem:[#allocation8 + $0x14] sm:$0xf] %v322
    %355 = vst [vmem:[#allocation8 + $0x18] sm:$0xf] %v323
    %356 = vst [vmem:[#allocation8 + $0x1c] sm:$0xf] %v324
    %357 = vst [vmem:[#allocation8 + $0x20] sm:$0xf] %v325
    %358 = vst [vmem:[#allocation8 + $0x24] sm:$0xf] %v326
    %359 = vst [vmem:[#allocation8 + $0x28] sm:$0xf] %v327
    %360 = vst [vmem:[#allocation8 + $0x2c] sm:$0xf] %v328
    %361 = vst [vmem:[#allocation8 + $0x30] sm:$0xf] %v329
    %362 = vst [vmem:[#allocation8 + $0x34] sm:$0xf] %v330
    %363 = vst [vmem:[#allocation8 + $0x38] sm:$0xf] %v331
    %364 = vst [vmem:[#allocation8 + $0x3c] sm:$0xf] %v332
    %v365 = vld [vmem:[#allocation7] sm:$0xf]
    %v366 = vld [vmem:[#allocation7 + $0x4] sm:$0xf]
    %v367 = vld [vmem:[#allocation7 + $0x8] sm:$0xf]
    %v368 = vld [vmem:[#allocation7 + $0xc] sm:$0xf]
    %v369 = vld [vmem:[#allocation7 + $0x10] sm:$0xf]
    %v370 = vld [vmem:[#allocation7 + $0x14] sm:$0xf]
    %v371 = vld [vmem:[#allocation7 + $0x18] sm:$0xf]
    %v372 = vld [vmem:[#allocation7 + $0x1c] sm:$0xf]
    %v373 = vld [vmem:[#allocation7 + $0x20] sm:$0xf]
    %v374 = vld [vmem:[#allocation7 + $0x24] sm:$0xf]
    %v375 = vld [vmem:[#allocation7 + $0x28] sm:$0xf]
    %v376 = vld [vmem:[#allocation7 + $0x2c] sm:$0xf]
    %v377 = vld [vmem:[#allocation7 + $0x30] sm:$0xf]
    %v378 = vld [vmem:[#allocation7 + $0x34] sm:$0xf]
    %v379 = vld [vmem:[#allocation7 + $0x38] sm:$0xf]
    %v380 = vld [vmem:[#allocation7 + $0x3c] sm:$0xf]
    %v397 = vunpack.c.l.b16 %v365
    %v398 = vunpack.c.l.b16 %v366
    %v399 = vunpack.c.l.b16 %v367
    %v400 = vunpack.c.l.b16 %v368
    %v401 = vunpack.c.l.b16 %v369
    %v402 = vunpack.c.l.b16 %v370
    %v403 = vunpack.c.l.b16 %v371
    %v404 = vunpack.c.l.b16 %v372
    %v405 = vunpack.c.l.b16 %v373
    %v406 = vunpack.c.l.b16 %v374
    %v407 = vunpack.c.l.b16 %v375
    %v408 = vunpack.c.l.b16 %v376
    %v409 = vunpack.c.l.b16 %v377
    %v410 = vunpack.c.l.b16 %v378
    %v411 = vunpack.c.l.b16 %v379
    %v412 = vunpack.c.l.b16 %v380
    %v413 = vpack.c.b16 %v398, %v397
    %v414 = vpack.c.b16 %v400, %v399
    %v415 = vpack.c.b16 %v402, %v401
    %v416 = vpack.c.b16 %v404, %v403
    %v417 = vpack.c.b16 %v406, %v405
    %v418 = vpack.c.b16 %v408, %v407
    %v419 = vpack.c.b16 %v410, %v409
    %v420 = vpack.c.b16 %v412, %v411
    %429 = vmatprep.subr.bf16.mxu0 0
    %430 = vmatpush1.bf16.msra.mxu0 %v413
    %431 = vmatprep.subr.bf16.mxu0 0
    %432 = vmatpush1.bf16.msra.mxu0 %v414
    %433 = vmatprep.subr.bf16.mxu0 0
    %434 = vmatpush1.bf16.msra.mxu0 %v415
    %435 = vmatprep.subr.bf16.mxu0 0
    %436 = vmatpush1.bf16.msra.mxu0 %v416
    %437 = vmatprep.subr.bf16.mxu0 0
    %438 = vmatpush1.bf16.msra.mxu0 %v417
    %439 = vmatprep.subr.bf16.mxu0 0
    %440 = vmatpush1.bf16.msra.mxu0 %v418
    %441 = vmatprep.subr.bf16.mxu0 0
    %442 = vmatpush1.bf16.msra.mxu0 %v419
    %443 = vmatprep.subr.bf16.mxu0 0
    %444 = vmatpush1.bf16.msra.mxu0 %v420
    %445 = vmatprep.subr.bf16.mxu0 0
    %446 = vmatpush1.bf16.msra.mxu0 0
    %447 = vmatprep.subr.bf16.mxu0 0
    %448 = vmatpush1.bf16.msra.mxu0 0
    %449 = vmatprep.subr.bf16.mxu0 0
    %450 = vmatpush1.bf16.msra.mxu0 0
    %451 = vmatprep.subr.bf16.mxu0 0
    %452 = vmatpush1.bf16.msra.mxu0 0
    %453 = vmatprep.subr.bf16.mxu0 0
    %454 = vmatpush1.bf16.msra.mxu0 0
    %455 = vmatprep.subr.bf16.mxu0 0
    %456 = vmatpush1.bf16.msra.mxu0 0
    %457 = vmatprep.subr.bf16.mxu0 0
    %458 = vmatpush1.bf16.msra.mxu0 0
    %459 = vmatprep.subr.bf16.mxu0 0
    %460 = vmatpush1.bf16.msra.mxu0 0
    %461 = vmatprep.mubr.bf16.mxu0 0
    %462 = vmatmul.mubr.bf16.gmra.mrb[0].mxu0 %v124
    %v463 = vpop.f32.mrb[0].mxu0
    %v464 = vadd.f32 0.0, %v463
    %v465 = vpop.f32.mrb[0].mxu0
    %v466 = vpop.f32.mrb[0].mxu0
    %v467 = vadd.f32 0.0, %v466
    %v468 = vpop.f32.mrb[0].mxu0
    %469 = vmatprep.mubr.bf16.mxu0 0
    %470 = vmatmul.mubr.bf16.gmra.mrb[0].mxu0 %v125
    %v471 = vpop.f32.mrb[0].mxu0
    %v472 = vadd.f32 0.0, %v471
    %v473 = vpop.f32.mrb[0].mxu0
    %v474 = vpop.f32.mrb[0].mxu0
    %v475 = vadd.f32 0.0, %v474
    %v476 = vpop.f32.mrb[0].mxu0
    %477 = vmatprep.mubr.bf16.mxu0 0
    %478 = vmatmul.mubr.bf16.gmra.mrb[0].mxu0 %v126
    %v479 = vpop.f32.mrb[0].mxu0
    %v480 = vadd.f32 0.0, %v479
    %v481 = vpop.f32.mrb[0].mxu0
    %v482 = vpop.f32.mrb[0].mxu0
    %v483 = vadd.f32 0.0, %v482
    %v484 = vpop.f32.mrb[0].mxu0
    %485 = vmatprep.mubr.bf16.mxu0 0
    %486 = vmatmul.mubr.bf16.gmra.mrb[0].mxu0 %v127
    %v487 = vpop.f32.mrb[0].mxu0
    %v488 = vadd.f32 0.0, %v487
    %v489 = vpop.f32.mrb[0].mxu0
    %v490 = vpop.f32.mrb[0].mxu0
    %v491 = vadd.f32 0.0, %v490
    %v492 = vpop.f32.mrb[0].mxu0
    %493 = vmatprep.mubr.bf16.mxu0 0
    %494 = vmatmul.mubr.bf16.gmra.mrb[0].mxu0 %v128
    %v495 = vpop.f32.mrb[0].mxu0
    %v496 = vadd.f32 0.0, %v495
    %v497 = vpop.f32.mrb[0].mxu0
    %v498 = vpop.f32.mrb[0].mxu0
    %v499 = vadd.f32 0.0, %v498
    %v500 = vpop.f32.mrb[0].mxu0
    %501 = vmatprep.mubr.bf16.mxu0 0
    %502 = vmatmul.mubr.bf16.gmra.mrb[0].mxu0 %v129
    %v503 = vpop.f32.mrb[0].mxu0
    %v504 = vadd.f32 0.0, %v503
    %v505 = vpop.f32.mrb[0].mxu0
    %v506 = vpop.f32.mrb[0].mxu0
    %v507 = vadd.f32 0.0, %v506
    %v508 = vpop.f32.mrb[0].mxu0
    %509 = vmatprep.mubr.bf16.mxu0 0
    %510 = vmatmul.mubr.bf16.gmra.mrb[0].mxu0 %v130
    %v511 = vpop.f32.mrb[0].mxu0
    %v512 = vadd.f32 0.0, %v511
    %v513 = vpop.f32.mrb[0].mxu0
    %v514 = vpop.f32.mrb[0].mxu0
    %v515 = vadd.f32 0.0, %v514
    %v516 = vpop.f32.mrb[0].mxu0
    %517 = vmatprep.mubr.bf16.mxu0 0
    %518 = vmatmul.mubr.bf16.gmra.mrb[0].mxu0 %v131
    %v519 = vpop.f32.mrb[0].mxu0
    %v520 = vadd.f32 0.0, %v519
    %v521 = vpop.f32.mrb[0].mxu0
    %v522 = vpop.f32.mrb[0].mxu0
    %v523 = vadd.f32 0.0, %v522
    %v524 = vpop.f32.mrb[0].mxu0
    %525 = vdwg.mxu0
    %v526 = vpack.c.bf16 %v467, %v464
    %v527 = vpack.c.bf16 %v475, %v472
    %v528 = vpack.c.bf16 %v483, %v480
    %v529 = vpack.c.bf16 %v491, %v488
    %v530 = vpack.c.bf16 %v499, %v496
    %v531 = vpack.c.bf16 %v507, %v504
    %v532 = vpack.c.bf16 %v515, %v512
    %v533 = vpack.c.bf16 %v523, %v520
    %v542 = vunpack.c.l.b16 %v526
    %v543 = vunpack.c.h.b16 %v526
    %v544 = vunpack.c.l.b16 %v527
    %v545 = vunpack.c.h.b16 %v527
    %v546 = vunpack.c.l.b16 %v528
    %v547 = vunpack.c.h.b16 %v528
    %v548 = vunpack.c.l.b16 %v529
    %v549 = vunpack.c.h.b16 %v529
    %v550 = vunpack.c.l.b16 %v530
    %v551 = vunpack.c.h.b16 %v530
    %v552 = vunpack.c.l.b16 %v531
    %v553 = vunpack.c.h.b16 %v531
    %v554 = vunpack.c.l.b16 %v532
    %v555 = vunpack.c.h.b16 %v532
    %v556 = vunpack.c.l.b16 %v533
    %v557 = vunpack.c.h.b16 %v533
    %v558 = vpack.c.b16 %v542, %v542
    %v559 = vpack.c.b16 %v543, %v543
    %v560 = vpack.c.b16 %v544, %v544
    %v561 = vpack.c.b16 %v545, %v545
    %v562 = vpack.c.b16 %v546, %v546
    %v563 = vpack.c.b16 %v547, %v547
    %v564 = vpack.c.b16 %v548, %v548
    %v565 = vpack.c.b16 %v549, %v549
    %v566 = vpack.c.b16 %v550, %v550
    %v567 = vpack.c.b16 %v551, %v551
    %v568 = vpack.c.b16 %v552, %v552
    %v569 = vpack.c.b16 %v553, %v553
    %v570 = vpack.c.b16 %v554, %v554
    %v571 = vpack.c.b16 %v555, %v555
    %v572 = vpack.c.b16 %v556, %v556
    %v573 = vpack.c.b16 %v557, %v557
    %590 = vst [vmem:[#allocation9] sm:$0xf] %v558
    %591 = vst [vmem:[#allocation9 + $0x4] sm:$0xf] %v559
    %592 = vst [vmem:[#allocation9 + $0x8] sm:$0xf] %v560
    %593 = vst [vmem:[#allocation9 + $0xc] sm:$0xf] %v561
    %594 = vst [vmem:[#allocation9 + $0x10] sm:$0xf] %v562
    %595 = vst [vmem:[#allocation9 + $0x14] sm:$0xf] %v563
    %596 = vst [vmem:[#allocation9 + $0x18] sm:$0xf] %v564
    %597 = vst [vmem:[#allocation9 + $0x1c] sm:$0xf] %v565
    %598 = vst [vmem:[#allocation9 + $0x20] sm:$0xf] %v566
    %599 = vst [vmem:[#allocation9 + $0x24] sm:$0xf] %v567
    %600 = vst [vmem:[#allocation9 + $0x28] sm:$0xf] %v568
    %601 = vst [vmem:[#allocation9 + $0x2c] sm:$0xf] %v569
    %602 = vst [vmem:[#allocation9 + $0x30] sm:$0xf] %v570
    %603 = vst [vmem:[#allocation9 + $0x34] sm:$0xf] %v571
    %604 = vst [vmem:[#allocation9 + $0x38] sm:$0xf] %v572
    %605 = vst [vmem:[#allocation9 + $0x3c] sm:$0xf] %v573
    // Predicated region
    $region26: #{tpu_custom_call.1} parent=1 // pred_check
      _
    $region27: #{tpu_custom_call.1} parent=1 // pred_check_branch
      %607 = sbr.rel (0) target = $region29
    $region28: #{tpu_custom_call.1} parent=1 // pred_region
      %s609 = ssub.s32 1024, 1024
      %610 = vsyncadd [#allocation4], %s609
      %s611 = sshll.u32 [#allocation8], 4
      %s612 = int_to_ptr.vmem [resolvable:$true] %s611
      %617 = dma.vmem_to_hbm [thread:$0]  %s612, 1024, %s3, [#allocation4], 64, 64, 4
    $region29: #{tpu_custom_call.1} parent=1 // pred_fallthru
      _
    // Predicated region
    $region30: #{tpu_custom_call.1} parent=1 // pred_check
      _
    $region31: #{tpu_custom_call.1} parent=1 // pred_check_branch
      %619 = sbr.rel (0) target = $region33
    $region32: #{tpu_custom_call.1} parent=1 // pred_region
      %s621 = ssub.s32 1024, 1024
      %622 = vsyncadd [#allocation10], %s621
      %s623 = sshll.u32 [#allocation9], 4
      %s624 = int_to_ptr.vmem [resolvable:$true] %s623
      %629 = dma.vmem_to_hbm [thread:$0]  %s624, 1024, %s4, [#allocation10], 64, 64, 4
    $region33: #{tpu_custom_call.1} parent=1 // pred_fallthru
      _
    // Predicated region
    $region34: #{tpu_custom_call.1} parent=1 // pred_check
      _
    $region35: #{tpu_custom_call.1} parent=1 // pred_check_branch
      %631 = sbr.rel (0) target = $region37
    $region36: #{tpu_custom_call.1} parent=1 // pred_region
      %632 = dma.done [#allocation4], 1024
    $region37: #{tpu_custom_call.1} parent=1 // pred_fallthru
      _
    // Predicated region
    $region38: #{tpu_custom_call.1} parent=1 // pred_check
      _
    $region39: #{tpu_custom_call.1} parent=1 // pred_check_branch
      %634 = sbr.rel (0) target = $region41
    $region40: #{tpu_custom_call.1} parent=1 // pred_region
      %635 = dma.done [#allocation10], 1024
    $region41: #{tpu_custom_call.1} parent=1 // pred_fallthru
      _
    %636 = vsyncpa [#allocation3], 1
    %637 = vsyncpa [#allocation6], 1
    %638 = vsyncpa [#allocation4], 1
    %639 = vsyncpa [#allocation10], 1

</llo_original>
